<compile_context>
chip_gen: v7x
topology: tpu7x:2x2x1
jax: 0.10.0
libtpu: 0.0.40
codegen_flags: <defaults>
</compile_context>

<pallas_src>
import functools
import math

import jax
import jax.numpy as jnp
import numpy as np
from jax.experimental import pallas as pl
from jax.experimental.pallas import tpu as pltpu


def make_gaussian_weights(channels: int, kernel_size: int, sigma: float) -> np.ndarray:
    """NumPy mirror of GaussianSmoothing.__init__ weight construction.

    Returns the depthwise Conv3d weight of shape (C, 1, 1, K, K) (OIDHW).
    Used only for the reference cross-check in __main__."""
    ks = [1, kernel_size, kernel_size]
    sg = [1.0, float(sigma), float(sigma)]
    grids = np.meshgrid(*[np.arange(s, dtype=np.float32) for s in ks], indexing="ij")
    kernel = np.ones(ks, dtype=np.float32)
    for size, std, mgrid in zip(ks, sg, grids):
        mean = (size - 1) / 2.0
        kernel = kernel * (
            1.0 / (std * math.sqrt(2.0 * math.pi))
            * np.exp(-(((mgrid - mean) / std) ** 2) / 2.0)
        )
    kernel = kernel / np.sum(kernel)                 # (1, K, K)
    kernel = kernel.reshape(1, 1, *kernel.shape)     # (1, 1, 1, K, K)
    kernel = np.tile(kernel, (channels, 1, 1, 1, 1)) # (C, 1, 1, K, K)
    return kernel.astype(np.float32)


def _blur_kernel(x_ref, o_ref, xpad_ref, *, H, W, K, p, pad_l, taps):
    """Separable symmetric Gaussian blur of BT frames (frames on the lane axis).

    x_ref:    VMEM (H, W, BT)                      input block
    o_ref:    VMEM (H, W, BT)                      output block
    xpad_ref: VMEM (H + 2p, pad_l + W + p, BT)     zero-padded staging scratch
    """
    Hp = H + 2 * p
    Ws = pad_l + W + p
    base = pad_l - p   # leftmost column read by the horizontal pass
    BT = xpad_ref.shape[2]

    # SAME zero padding: zero only the border strips of the read window
    # (rows [0,Hp) x cols [base,Ws)).  The interior is rewritten below and
    # everything outside the read window is never touched, so the full-scratch
    # zeroing of v1 is unnecessary.  Done unconditionally every step (cheap),
    # which is megacore-safe (each core's private scratch gets initialized).
    if p > 0:
        xpad_ref[0:p, :, :] = jnp.zeros((p, Ws, BT), dtype=xpad_ref.dtype)          # top rows
        xpad_ref[p + H:Hp, :, :] = jnp.zeros((p, Ws, BT), dtype=xpad_ref.dtype)     # bottom rows
        xpad_ref[p:p + H, base:pad_l, :] = jnp.zeros((H, p, BT), dtype=xpad_ref.dtype)       # left cols
        xpad_ref[p:p + H, pad_l + W:Ws, :] = jnp.zeros((H, p, BT), dtype=xpad_ref.dtype)     # right cols

    # Stage the frame interior at leading offset p and 8-aligned sublane
    # offset pad_l (all stores aligned; only some reads below are unaligned).
    xpad_ref[p:p + H, pad_l:pad_l + W, :] = x_ref[...]

    # Horizontal (W) pass, exploiting tap symmetry (taps[j] == taps[K-1-j]):
    # center read is sublane-aligned (offset pad_l).
    hpass = taps[p] * xpad_ref[:, pad_l:pad_l + W, :]
    for j in range(p):
        hpass = hpass + taps[j] * (
            xpad_ref[:, base + j:base + j + W, :]
            + xpad_ref[:, base + (K - 1 - j):base + (K - 1 - j) + W, :])
    # TODO(synk): if the bundle shows vld/shuffle saturation from the K-1
    # unaligned sublane reads, generate the shifted views with pltpu.roll
    # (idle XLU slot) or move the tap sums onto the MXU (banded Toeplitz).

    # Vertical (H) pass on the intermediate, same symmetry (leading-dim slices).
    out = taps[p] * hpass[p:p + H]
    for i in range(p):
        out = out + taps[i] * (hpass[i:i + H] + hpass[K - 1 - i:K - 1 - i + H])

    o_ref[...] = out.astype(o_ref.dtype)


def gaussian_smoothing(x: jax.Array, kernel_size: int, sigma: float,
                       *, vmem_budget_bytes: int = 24 << 20) -> jax.Array:
    """Forward pass of GaussianSmoothing.

    x: (N, C, T, H, W) float32 (NCDHW, like PyTorch).  Returns same shape/dtype.
    """
    N, C, T, H, W = x.shape
    K = int(kernel_size)
    assert K % 2 == 1, "module SAME-padding semantics require an odd kernel_size"
    p = (K - 1) // 2
    pad_l = ((p + 7) // 8) * 8 if p > 0 else 0   # 8-aligned left pad inside the scratch
    Hp = H + 2 * p
    Ws = pad_l + W + p

    # Normalized 1D Gaussian taps.  outer(taps, taps) equals the module's
    # jointly-normalized (1, K, K) kernel exactly (the size-1 temporal factor
    # and the 1/(sigma*sqrt(2*pi)) prefactors cancel in the normalization), and
    # every channel uses the same kernel, so the taps are baked in as
    # compile-time constants (weights frozen at construction; requires_grad=False).
    m = (K - 1) / 2.0
    g = np.exp(-(((np.arange(K, dtype=np.float64) - m) / float(sigma)) ** 2) / 2.0)
    g = g / g.sum()
    taps = tuple(float(v) for v in g)

    B = N * C * T

    # VMEM footprint per grid step (f32): in/out double buffers + padded
    # staging scratch + the compiler-materialized hpass (Hp*W) and out (H*W)
    # temporaries (they far exceed the vreg file and live in VMEM).
    def footprint(bt):
        return 4 * bt * (4 * H * W + Hp * Ws + Hp * W + H * W)

    if footprint(128) > vmem_budget_bytes:
        # TODO(synk): tile H into row strips with a (K-1)-row halo for very
        # large frames (matters most on v7x with 64 MiB VMEM); not needed at
        # the frame sizes this module is used with.
        raise NotImplementedError(
            "frame too large for a single VMEM block; H row-strip tiling not implemented")

    # Lane tile: multiple of 128, grown while (a) it fits the VMEM budget and
    # (b) at least `min_grid_steps` grid steps remain, so the DMA pipeline
    # stays full and the 'parallel' axis can be split across v7x TensorCores.
    min_grid_steps = 4
    BT = 128
    b_ceil = 128 * pl.cdiv(B, 128)
    while (BT < 1024 and 2 * BT <= b_ceil
           and pl.cdiv(B, 2 * BT) >= min_grid_steps
           and footprint(2 * BT) <= vmem_budget_bytes):
        BT *= 2
    Bpad = BT * pl.cdiv(B, BT)

    # Layout plumbing only: put frames on the lane axis -> (H, W, Bpad).
    # TODO(synk): for W >= 128 (real video frames) run in native (B, H, W)
    # layout with W on lanes to drop these two extra HBM passes.
    xt = jnp.transpose(x.reshape(B, H, W), (1, 2, 0))
    if Bpad != B:
        xt = jnp.pad(xt, ((0, 0), (0, 0), (0, Bpad - B)))

    kernel = functools.partial(
        _blur_kernel, H=H, W=W, K=K, p=p, pad_l=pad_l, taps=taps)

    # Raise the scoped-VMEM limit explicitly (v5e default is only 16 MiB);
    # with the default 24 MiB budget this stays <= 32 MiB, safe on v7x too.
    vmem_limit = int(max(footprint(BT) + (8 << 20), 24 << 20))

    out_t = pl.pallas_call(
        kernel,
        out_shape=jax.ShapeDtypeStruct((H, W, Bpad), x.dtype),
        grid=(Bpad // BT,),
        in_specs=[pl.BlockSpec((H, W, BT), lambda b: (0, 0, b))],
        out_specs=pl.BlockSpec((H, W, BT), lambda b: (0, 0, b)),
        scratch_shapes=[pltpu.VMEM((Hp, Ws, BT), jnp.float32)],
        compiler_params=pltpu.CompilerParams(
            dimension_semantics=("parallel",),
            vmem_limit_bytes=vmem_limit),
    )(xt)

    out = jnp.transpose(out_t[:, :, :B], (2, 0, 1)).reshape(N, C, T, H, W)
    return out
    # TODO(synk): the PyTorch forward also clamps conv.weight to >= 0 after the
    # conv (in-place parameter mutation); the Gaussian weights are already
    # non-negative so it has no effect on the returned output and is omitted.


if __name__ == "__main__":
    # Module config: Conv3d(3, 3, groups=channels) => channels must be 3.
    channels = 3
    kernel_size = 5
    sigma = 1.0

    N, C, T, H, W = 2, channels, 4, 16, 16

    key = jax.random.PRNGKey(0)
    x = jax.random.normal(key, (N, C, T, H, W), dtype=jnp.float32)

    out = gaussian_smoothing(x, kernel_size, sigma)
    out = jax.block_until_ready(out)

    # Cross-check against XLA's grouped conv with the module's exact weights.
    weight = make_gaussian_weights(channels, kernel_size, sigma)  # (C,1,1,K,K)
    p = (kernel_size - 1) // 2
    ref = jax.lax.conv_general_dilated(
        x, jnp.asarray(weight),
        window_strides=(1, 1, 1),
        padding=[(0, 0), (p, p), (p, p)],
        dimension_numbers=("NCDHW", "OIDHW", "NCDHW"),
        feature_group_count=channels,
    )
    ref = jax.block_until_ready(ref)
    assert out.shape == (N, C, T, H, W)
    np.testing.assert_allclose(np.asarray(out), np.asarray(ref), rtol=1e-5, atol=1e-5)

    print("KERNEL_OK")
</pallas_src>

<mosaic_0001>
module attributes {stable_mosaic.version = 11 : i64} {
  func.func @_blur_kernel(%arg0: i32, %arg1: memref<16x16x128xf32, #tpu.memory_space<vmem>>, %arg2: memref<16x16x128xf32, #tpu.memory_space<vmem>>, %arg3: memref<20x26x128xf32, #tpu.memory_space<vmem>>) attributes {dimension_semantics = [#tpu.dimension_semantics<parallel>], iteration_bounds = array<i64: 1>, scalar_prefetch = 0 : i64, scratch_operands = 1 : i64, tpu.core_type = #tpu.core_type<tc>, window_params = [{transform_indices = @transform_0, window_bounds = array<i64: 16, 16, 128>}, {transform_indices = @transform_1, window_bounds = array<i64: 16, 16, 128>}]} {
    %cst = arith.constant 0.000000e+00 : f32
    %0 = vector.broadcast %cst : f32 to vector<2x26x128xf32>
    %c0 = arith.constant 0 : index
    %c0_0 = arith.constant 0 : index
    %c0_1 = arith.constant 0 : index
    %1 = vector.load %arg3[%c0, %c0_0, %c0_1] : memref<20x26x128xf32, #tpu.memory_space<vmem>>, vector<2x26x128xf32>
    tpu.vector_store %arg3[%c0, %c0_0, %c0_1], %0 {strides = array<i32>} : memref<20x26x128xf32, #tpu.memory_space<vmem>>, vector<2x26x128xf32>,
    %cst_2 = arith.constant 0.000000e+00 : f32
    %2 = vector.broadcast %cst_2 : f32 to vector<2x26x128xf32>
    %c18 = arith.constant 18 : index
    %c0_3 = arith.constant 0 : index
    %c0_4 = arith.constant 0 : index
    %3 = vector.load %arg3[%c18, %c0_3, %c0_4] : memref<20x26x128xf32, #tpu.memory_space<vmem>>, vector<2x26x128xf32>
    tpu.vector_store %arg3[%c18, %c0_3, %c0_4], %2 {strides = array<i32>} : memref<20x26x128xf32, #tpu.memory_space<vmem>>, vector<2x26x128xf32>,
    %cst_5 = arith.constant 0.000000e+00 : f32
    %4 = vector.broadcast %cst_5 : f32 to vector<16x2x128xf32>
    %c2 = arith.constant 2 : index
    %c6 = arith.constant 6 : index
    %c0_6 = arith.constant 0 : index
    %5 = vector.load %arg3[%c2, %c6, %c0_6] : memref<20x26x128xf32, #tpu.memory_space<vmem>>, vector<16x2x128xf32>
    tpu.vector_store %arg3[%c2, %c6, %c0_6], %4 {strides = array<i32>} : memref<20x26x128xf32, #tpu.memory_space<vmem>>, vector<16x2x128xf32>,
    %cst_7 = arith.constant 0.000000e+00 : f32
    %6 = vector.broadcast %cst_7 : f32 to vector<16x2x128xf32>
    %c2_8 = arith.constant 2 : index
    %c24 = arith.constant 24 : index
    %c0_9 = arith.constant 0 : index
    %7 = vector.load %arg3[%c2_8, %c24, %c0_9] : memref<20x26x128xf32, #tpu.memory_space<vmem>>, vector<16x2x128xf32>
    tpu.vector_store %arg3[%c2_8, %c24, %c0_9], %6 {strides = array<i32>} : memref<20x26x128xf32, #tpu.memory_space<vmem>>, vector<16x2x128xf32>,
    %c0_10 = arith.constant 0 : index
    %c0_11 = arith.constant 0 : index
    %c0_12 = arith.constant 0 : index
    %8 = vector.load %arg1[%c0_10, %c0_11, %c0_12] : memref<16x16x128xf32, #tpu.memory_space<vmem>>, vector<16x16x128xf32>
    %c2_13 = arith.constant 2 : index
    %c8 = arith.constant 8 : index
    %c0_14 = arith.constant 0 : index
    %9 = vector.load %arg3[%c2_13, %c8, %c0_14] : memref<20x26x128xf32, #tpu.memory_space<vmem>>, vector<16x16x128xf32>
    tpu.vector_store %arg3[%c2_13, %c8, %c0_14], %8 {strides = array<i32>} : memref<20x26x128xf32, #tpu.memory_space<vmem>>, vector<16x16x128xf32>,
    %c0_15 = arith.constant 0 : index
    %c8_16 = arith.constant 8 : index
    %c0_17 = arith.constant 0 : index
    %10 = vector.load %arg3[%c0_15, %c8_16, %c0_17] : memref<20x26x128xf32, #tpu.memory_space<vmem>>, vector<20x16x128xf32>
    %cst_18 = arith.constant 0.402619958 : f32
    %11 = vector.broadcast %cst_18 : f32 to vector<20x16x128xf32>
    %12 = arith.mulf %11, %10 : vector<20x16x128xf32>
    %c0_19 = arith.constant 0 : index
    %c6_20 = arith.constant 6 : index
    %c0_21 = arith.constant 0 : index
    %13 = vector.load %arg3[%c0_19, %c6_20, %c0_21] : memref<20x26x128xf32, #tpu.memory_space<vmem>>, vector<20x16x128xf32>
    %c0_22 = arith.constant 0 : index
    %c10 = arith.constant 10 : index
    %c0_23 = arith.constant 0 : index
    %14 = vector.load %arg3[%c0_22, %c10, %c0_23] : memref<20x26x128xf32, #tpu.memory_space<vmem>>, vector<20x16x128xf32>
    %15 = arith.addf %13, %14 : vector<20x16x128xf32>
    %cst_24 = arith.constant 0.054488685 : f32
    %16 = vector.broadcast %cst_24 : f32 to vector<20x16x128xf32>
    %17 = arith.mulf %16, %15 : vector<20x16x128xf32>
    %18 = arith.addf %12, %17 : vector<20x16x128xf32>
    %c0_25 = arith.constant 0 : index
    %c7 = arith.constant 7 : index
    %c0_26 = arith.constant 0 : index
    %19 = vector.load %arg3[%c0_25, %c7, %c0_26] : memref<20x26x128xf32, #tpu.memory_space<vmem>>, vector<20x16x128xf32>
    %c0_27 = arith.constant 0 : index
    %c9 = arith.constant 9 : index
    %c0_28 = arith.constant 0 : index
    %20 = vector.load %arg3[%c0_27, %c9, %c0_28] : memref<20x26x128xf32, #tpu.memory_space<vmem>>, vector<20x16x128xf32>
    %21 = arith.addf %19, %20 : vector<20x16x128xf32>
    %cst_29 = arith.constant 0.244201347 : f32
    %22 = vector.broadcast %cst_29 : f32 to vector<20x16x128xf32>
    %23 = arith.mulf %22, %21 : vector<20x16x128xf32>
    %24 = arith.addf %18, %23 : vector<20x16x128xf32>
    %25 = vector.extract_strided_slice %24 {offsets = [2, 0, 0], sizes = [16, 16, 128], strides = [1, 1, 1]} : vector<20x16x128xf32> to vector<16x16x128xf32>
    %cst_30 = arith.constant 0.402619958 : f32
    %26 = vector.broadcast %cst_30 : f32 to vector<16x16x128xf32>
    %27 = arith.mulf %26, %25 : vector<16x16x128xf32>
    %28 = vector.extract_strided_slice %24 {offsets = [0, 0, 0], sizes = [16, 16, 128], strides = [1, 1, 1]} : vector<20x16x128xf32> to vector<16x16x128xf32>
    %29 = vector.extract_strided_slice %24 {offsets = [4, 0, 0], sizes = [16, 16, 128], strides = [1, 1, 1]} : vector<20x16x128xf32> to vector<16x16x128xf32>
    %30 = arith.addf %28, %29 : vector<16x16x128xf32>
    %cst_31 = arith.constant 0.054488685 : f32
    %31 = vector.broadcast %cst_31 : f32 to vector<16x16x128xf32>
    %32 = arith.mulf %31, %30 : vector<16x16x128xf32>
    %33 = arith.addf %27, %32 : vector<16x16x128xf32>
    %34 = vector.extract_strided_slice %24 {offsets = [1, 0, 0], sizes = [16, 16, 128], strides = [1, 1, 1]} : vector<20x16x128xf32> to vector<16x16x128xf32>
    %35 = vector.extract_strided_slice %24 {offsets = [3, 0, 0], sizes = [16, 16, 128], strides = [1, 1, 1]} : vector<20x16x128xf32> to vector<16x16x128xf32>
    %36 = arith.addf %34, %35 : vector<16x16x128xf32>
    %cst_32 = arith.constant 0.244201347 : f32
    %37 = vector.broadcast %cst_32 : f32 to vector<16x16x128xf32>
    %38 = arith.mulf %37, %36 : vector<16x16x128xf32>
    %39 = arith.addf %33, %38 : vector<16x16x128xf32>
    %c0_33 = arith.constant 0 : index
    %c0_34 = arith.constant 0 : index
    %c0_35 = arith.constant 0 : index
    %40 = vector.load %arg2[%c0_33, %c0_34, %c0_35] : memref<16x16x128xf32, #tpu.memory_space<vmem>>, vector<16x16x128xf32>
    tpu.vector_store %arg2[%c0_33, %c0_34, %c0_35], %39 {strides = array<i32>} : memref<16x16x128xf32, #tpu.memory_space<vmem>>, vector<16x16x128xf32>,
    return
  }
  func.func @transform_0(%arg0: i32) -> (i32, i32, i32) {
    %c0_i32 = arith.constant 0 : i32
    %c0_i32_0 = arith.constant 0 : i32
    %c0_i32_1 = arith.constant 0 : i32
    return %c0_i32, %c0_i32_0, %arg0 : i32, i32, i32
  }
  func.func @transform_1(%arg0: i32) -> (i32, i32, i32) {
    %c0_i32 = arith.constant 0 : i32
    %c0_i32_0 = arith.constant 0 : i32
    %c0_i32_1 = arith.constant 0 : i32
    return %c0_i32, %c0_i32_0, %arg0 : i32, i32, i32
  }
}

</mosaic_0001>

<llo_original>
// kernel: tpu_custom_call.1
$region0: #{tpu_custom_call.1}
  #allocation0 [shape = 'u32[]', space=smem, size = 0x4, offset = 0x4, fixed_abs, tag = 'smem constant byte address 0x4 - core index']
  #allocation1 [shape = 'u32[144,128]{1,0:T(1,128)}', space=vmem, size = 0x12000, scoped, tag = 'internal scratch']
  #allocation2 [shape = 'f32[20,26,128]{2,1,0:T(8,128)}', space=vmem, size = 0x50000, scoped, tag = 'scratch operand']
  %s0 = inlined_call_operand.hbm [shape: f32[16,16,128], index: 0, kind: input, shape index: {}]
  %s1 = inlined_call_operand.hbm [shape: f32[16,16,128], index: 1, kind: output, shape index: {}]
  %s2 = sld [smem:[#allocation0]]
  $region18: #{tpu_custom_call.1} parent=0
    _
  %s4 = ssub.s32 1, %s2
  %s5 = scalar_select 0, %s4, %s2
  $region1: #{tpu_custom_call.1} parent=0
    #allocation3 [shape = 'u8[131072]{0}', space=vmem, size = 0x20000, scoped, tag = 'input window, operand 0, single buffered']
    #allocation4 [shape = 's32[1]{0}', space=sflag, size = 0x4, scoped, tag = 'scoped memory for tpu_custom_call.1']
    #allocation5 [shape = 's32[1]{0}', space=sflag, size = 0x4, scoped, tag = 'scoped memory for tpu_custom_call.1']
    #allocation6 [shape = 'u8[131072]{0}', space=vmem, size = 0x20000, scoped, tag = 'output window, operand 0, single buffered']
    %6 = vsyncpa [#allocation4], 0
    %7 = vsyncpa [#allocation5], 0
    // Predicated region
    $region2: #{tpu_custom_call.1} parent=1 // pred_check
      _
    $region3: #{tpu_custom_call.1} parent=1 // pred_check_branch
      %9 = sbr.rel (0) target = $region5
    $region4: #{tpu_custom_call.1} parent=1 // pred_region
      %s11 = ssub.s32 4096, 4096
      %12 = vsyncadd [#allocation4], %s11
      %s13 = sshll.u32 [#allocation3], 4
      %s14 = int_to_ptr.vmem [resolvable:$true] %s13
      %19 = dma.hbm_to_vmem [thread:$0]  %s0, 4096, %s14, [#allocation4], 128, 128, 8
    $region5: #{tpu_custom_call.1} parent=1 // pred_fallthru
      _
    // Predicated region
    $region6: #{tpu_custom_call.1} parent=1 // pred_check
      _
    $region7: #{tpu_custom_call.1} parent=1 // pred_check_branch
      %21 = sbr.rel (0) target = $region9
    $region8: #{tpu_custom_call.1} parent=1 // pred_region
      %22 = dma.done [#allocation4], 4096
    $region9: #{tpu_custom_call.1} parent=1 // pred_fallthru
      _
    %23 = vst [vmem:[#allocation2] sm:$0xff] 0.0
    %24 = vst [vmem:[#allocation2 + $0x8] sm:$0xff] 0.0
    %25 = vst [vmem:[#allocation2 + $0x10] sm:$0xff] 0.0
    %26 = vst [vmem:[#allocation2 + $0x18] sm:$0x3] 0.0
    %27 = vst [vmem:[#allocation2 + $0x20] sm:$0xff] 0.0
    %28 = vst [vmem:[#allocation2 + $0x28] sm:$0xff] 0.0
    %29 = vst [vmem:[#allocation2 + $0x30] sm:$0xff] 0.0
    %30 = vst [vmem:[#allocation2 + $0x38] sm:$0x3] 0.0
    %s31 = scalar_lea.vmem [#allocation2], 576
    %32 = vst [vmem:[%s31] sm:$0xff] 0.0
    %33 = vst [vmem:[%s31 + $0x8] sm:$0xff] 0.0
    %34 = vst [vmem:[%s31 + $0x10] sm:$0xff] 0.0
    %35 = vst [vmem:[%s31 + $0x18] sm:$0x3] 0.0
    %36 = vst [vmem:[%s31 + $0x20] sm:$0xff] 0.0
    %37 = vst [vmem:[%s31 + $0x28] sm:$0xff] 0.0
    %38 = vst [vmem:[%s31 + $0x30] sm:$0xff] 0.0
    %39 = vst [vmem:[%s31 + $0x38] sm:$0x3] 0.0
    %s40 = scalar_lea.vmem [#allocation2], 64
    %41 = vst [vmem:[%s40 + $0x6] sm:$0x3] 0.0
    %42 = vst [vmem:[%s40 + $0x26] sm:$0x3] 0.0
    %43 = vst [vmem:[%s40 + $0x46] sm:$0x3] 0.0
    %44 = vst [vmem:[%s40 + $0x66] sm:$0x3] 0.0
    %45 = vst [vmem:[%s40 + $0x86] sm:$0x3] 0.0
    %46 = vst [vmem:[%s40 + $0xa6] sm:$0x3] 0.0
    %47 = vst [vmem:[%s40 + $0xc6] sm:$0x3] 0.0
    %48 = vst [vmem:[%s40 + $0xe6] sm:$0x3] 0.0
    %49 = vst [vmem:[%s40 + $0x106] sm:$0x3] 0.0
    %50 = vst [vmem:[%s40 + $0x126] sm:$0x3] 0.0
    %51 = vst [vmem:[%s40 + $0x146] sm:$0x3] 0.0
    %52 = vst [vmem:[%s40 + $0x166] sm:$0x3] 0.0
    %53 = vst [vmem:[%s40 + $0x186] sm:$0x3] 0.0
    %54 = vst [vmem:[%s40 + $0x1a6] sm:$0x3] 0.0
    %55 = vst [vmem:[%s40 + $0x1c6] sm:$0x3] 0.0
    %56 = vst [vmem:[%s40 + $0x1e6] sm:$0x3] 0.0
    %57 = vst [vmem:[%s40 + $0x18] sm:$0x3] 0.0
    %58 = vst [vmem:[%s40 + $0x38] sm:$0x3] 0.0
    %59 = vst [vmem:[%s40 + $0x58] sm:$0x3] 0.0
    %60 = vst [vmem:[%s40 + $0x78] sm:$0x3] 0.0
    %61 = vst [vmem:[%s40 + $0x98] sm:$0x3] 0.0
    %62 = vst [vmem:[%s40 + $0xb8] sm:$0x3] 0.0
    %63 = vst [vmem:[%s40 + $0xd8] sm:$0x3] 0.0
    %64 = vst [vmem:[%s40 + $0xf8] sm:$0x3] 0.0
    %65 = vst [vmem:[%s40 + $0x118] sm:$0x3] 0.0
    %66 = vst [vmem:[%s40 + $0x138] sm:$0x3] 0.0
    %67 = vst [vmem:[%s40 + $0x158] sm:$0x3] 0.0
    %68 = vst [vmem:[%s40 + $0x178] sm:$0x3] 0.0
    %69 = vst [vmem:[%s40 + $0x198] sm:$0x3] 0.0
    %70 = vst [vmem:[%s40 + $0x1b8] sm:$0x3] 0.0
    %71 = vst [vmem:[%s40 + $0x1d8] sm:$0x3] 0.0
    %72 = vst [vmem:[%s40 + $0x1f8] sm:$0x3] 0.0
    %v73 = vld [vmem:[#allocation3] sm:$0xff]
    %v74 = vld [vmem:[#allocation3 + $0x8] sm:$0xff]
    %v75 = vld [vmem:[#allocation3 + $0x10] sm:$0xff]
    %v76 = vld [vmem:[#allocation3 + $0x18] sm:$0xff]
    %v77 = vld [vmem:[#allocation3 + $0x20] sm:$0xff]
    %v78 = vld [vmem:[#allocation3 + $0x28] sm:$0xff]
    %v79 = vld [vmem:[#allocation3 + $0x30] sm:$0xff]
    %v80 = vld [vmem:[#allocation3 + $0x38] sm:$0xff]
    %v81 = vld [vmem:[#allocation3 + $0x40] sm:$0xff]
    %v82 = vld [vmem:[#allocation3 + $0x48] sm:$0xff]
    %v83 = vld [vmem:[#allocation3 + $0x50] sm:$0xff]
    %v84 = vld [vmem:[#allocation3 + $0x58] sm:$0xff]
    %v85 = vld [vmem:[#allocation3 + $0x60] sm:$0xff]
    %v86 = vld [vmem:[#allocation3 + $0x68] sm:$0xff]
    %v87 = vld [vmem:[#allocation3 + $0x70] sm:$0xff]
    %v88 = vld [vmem:[#allocation3 + $0x78] sm:$0xff]
    %v89 = vld [vmem:[#allocation3 + $0x80] sm:$0xff]
    %v90 = vld [vmem:[#allocation3 + $0x88] sm:$0xff]
    %v91 = vld [vmem:[#allocation3 + $0x90] sm:$0xff]
    %v92 = vld [vmem:[#allocation3 + $0x98] sm:$0xff]
    %v93 = vld [vmem:[#allocation3 + $0xa0] sm:$0xff]
    %v94 = vld [vmem:[#allocation3 + $0xa8] sm:$0xff]
    %v95 = vld [vmem:[#allocation3 + $0xb0] sm:$0xff]
    %v96 = vld [vmem:[#allocation3 + $0xb8] sm:$0xff]
    %v97 = vld [vmem:[#allocation3 + $0xc0] sm:$0xff]
    %v98 = vld [vmem:[#allocation3 + $0xc8] sm:$0xff]
    %v99 = vld [vmem:[#allocation3 + $0xd0] sm:$0xff]
    %v100 = vld [vmem:[#allocation3 + $0xd8] sm:$0xff]
    %v101 = vld [vmem:[#allocation3 + $0xe0] sm:$0xff]
    %v102 = vld [vmem:[#allocation3 + $0xe8] sm:$0xff]
    %v103 = vld [vmem:[#allocation3 + $0xf0] sm:$0xff]
    %v104 = vld [vmem:[#allocation3 + $0xf8] sm:$0xff]
    %105 = vst [vmem:[%s40 + $0x8] sm:$0xff] %v73
    %106 = vst [vmem:[%s40 + $0x10] sm:$0xff] %v74
    %107 = vst [vmem:[%s40 + $0x28] sm:$0xff] %v75
    %108 = vst [vmem:[%s40 + $0x30] sm:$0xff] %v76
    %109 = vst [vmem:[%s40 + $0x48] sm:$0xff] %v77
    %110 = vst [vmem:[%s40 + $0x50] sm:$0xff] %v78
    %111 = vst [vmem:[%s40 + $0x68] sm:$0xff] %v79
    %112 = vst [vmem:[%s40 + $0x70] sm:$0xff] %v80
    %113 = vst [vmem:[%s40 + $0x88] sm:$0xff] %v81
    %114 = vst [vmem:[%s40 + $0x90] sm:$0xff] %v82
    %115 = vst [vmem:[%s40 + $0xa8] sm:$0xff] %v83
    %116 = vst [vmem:[%s40 + $0xb0] sm:$0xff] %v84
    %117 = vst [vmem:[%s40 + $0xc8] sm:$0xff] %v85
    %118 = vst [vmem:[%s40 + $0xd0] sm:$0xff] %v86
    %119 = vst [vmem:[%s40 + $0xe8] sm:$0xff] %v87
    %120 = vst [vmem:[%s40 + $0xf0] sm:$0xff] %v88
    %121 = vst [vmem:[%s40 + $0x108] sm:$0xff] %v89
    %122 = vst [vmem:[%s40 + $0x110] sm:$0xff] %v90
    %123 = vst [vmem:[%s40 + $0x128] sm:$0xff] %v91
    %124 = vst [vmem:[%s40 + $0x130] sm:$0xff] %v92
    %125 = vst [vmem:[%s40 + $0x148] sm:$0xff] %v93
    %126 = vst [vmem:[%s40 + $0x150] sm:$0xff] %v94
    %127 = vst [vmem:[%s40 + $0x168] sm:$0xff] %v95
    %128 = vst [vmem:[%s40 + $0x170] sm:$0xff] %v96
    %129 = vst [vmem:[%s40 + $0x188] sm:$0xff] %v97
    %130 = vst [vmem:[%s40 + $0x190] sm:$0xff] %v98
    %131 = vst [vmem:[%s40 + $0x1a8] sm:$0xff] %v99
    %132 = vst [vmem:[%s40 + $0x1b0] sm:$0xff] %v100
    %133 = vst [vmem:[%s40 + $0x1c8] sm:$0xff] %v101
    %134 = vst [vmem:[%s40 + $0x1d0] sm:$0xff] %v102
    %135 = vst [vmem:[%s40 + $0x1e8] sm:$0xff] %v103
    %136 = vst [vmem:[%s40 + $0x1f0] sm:$0xff] %v104
    %v137 = vld [vmem:[#allocation2 + $0x8] sm:$0xff]
    %v138 = vld [vmem:[#allocation2 + $0x10] sm:$0xff]
    %v139 = vld [vmem:[#allocation2 + $0x28] sm:$0xff]
    %v140 = vld [vmem:[#allocation2 + $0x30] sm:$0xff]
    %v141 = vld [vmem:[#allocation2 + $0x48] sm:$0xff]
    %v142 = vld [vmem:[#allocation2 + $0x50] sm:$0xff]
    %v143 = vld [vmem:[#allocation2 + $0x68] sm:$0xff]
    %v144 = vld [vmem:[#allocation2 + $0x70] sm:$0xff]
    %v145 = vld [vmem:[#allocation2 + $0x88] sm:$0xff]
    %v146 = vld [vmem:[#allocation2 + $0x90] sm:$0xff]
    %v147 = vld [vmem:[#allocation2 + $0xa8] sm:$0xff]
    %v148 = vld [vmem:[#allocation2 + $0xb0] sm:$0xff]
    %v149 = vld [vmem:[#allocation2 + $0xc8] sm:$0xff]
    %v150 = vld [vmem:[#allocation2 + $0xd0] sm:$0xff]
    %v151 = vld [vmem:[#allocation2 + $0xe8] sm:$0xff]
    %v152 = vld [vmem:[#allocation2 + $0xf0] sm:$0xff]
    %v153 = vld [vmem:[#allocation2 + $0x108] sm:$0xff]
    %v154 = vld [vmem:[#allocation2 + $0x110] sm:$0xff]
    %v155 = vld [vmem:[#allocation2 + $0x128] sm:$0xff]
    %v156 = vld [vmem:[#allocation2 + $0x130] sm:$0xff]
    %v157 = vld [vmem:[#allocation2 + $0x148] sm:$0xff]
    %v158 = vld [vmem:[#allocation2 + $0x150] sm:$0xff]
    %v159 = vld [vmem:[#allocation2 + $0x168] sm:$0xff]
    %v160 = vld [vmem:[#allocation2 + $0x170] sm:$0xff]
    %v161 = vld [vmem:[#allocation2 + $0x188] sm:$0xff]
    %v162 = vld [vmem:[#allocation2 + $0x190] sm:$0xff]
    %v163 = vld [vmem:[#allocation2 + $0x1a8] sm:$0xff]
    %v164 = vld [vmem:[#allocation2 + $0x1b0] sm:$0xff]
    %v165 = vld [vmem:[#allocation2 + $0x1c8] sm:$0xff]
    %v166 = vld [vmem:[#allocation2 + $0x1d0] sm:$0xff]
    %v167 = vld [vmem:[#allocation2 + $0x1e8] sm:$0xff]
    %v168 = vld [vmem:[#allocation2 + $0x1f0] sm:$0xff]
    %v169 = vld [vmem:[#allocation2 + $0x208] sm:$0xff]
    %v170 = vld [vmem:[#allocation2 + $0x210] sm:$0xff]
    %v171 = vld [vmem:[#allocation2 + $0x228] sm:$0xff]
    %v172 = vld [vmem:[#allocation2 + $0x230] sm:$0xff]
    %v173 = vld [vmem:[#allocation2 + $0x248] sm:$0xff]
    %v174 = vld [vmem:[#allocation2 + $0x250] sm:$0xff]
    %v175 = vld [vmem:[#allocation2 + $0x268] sm:$0xff]
    %v176 = vld [vmem:[#allocation2 + $0x270] sm:$0xff]
    %v177 = vmul.f32 %v137, 0.40261996
    %v178 = vmul.f32 %v138, 0.40261996
    %v179 = vmul.f32 %v139, 0.40261996
    %v180 = vmul.f32 %v140, 0.40261996
    %v181 = vmul.f32 %v141, 0.40261996
    %v182 = vmul.f32 %v142, 0.40261996
    %v183 = vmul.f32 %v143, 0.40261996
    %v184 = vmul.f32 %v144, 0.40261996
    %v185 = vmul.f32 %v145, 0.40261996
    %v186 = vmul.f32 %v146, 0.40261996
    %v187 = vmul.f32 %v147, 0.40261996
    %v188 = vmul.f32 %v148, 0.40261996
    %v189 = vmul.f32 %v149, 0.40261996
    %v190 = vmul.f32 %v150, 0.40261996
    %v191 = vmul.f32 %v151, 0.40261996
    %v192 = vmul.f32 %v152, 0.40261996
    %v193 = vmul.f32 %v153, 0.40261996
    %v194 = vmul.f32 %v154, 0.40261996
    %v195 = vmul.f32 %v155, 0.40261996
    %v196 = vmul.f32 %v156, 0.40261996
    %v197 = vmul.f32 %v157, 0.40261996
    %v198 = vmul.f32 %v158, 0.40261996
    %v199 = vmul.f32 %v159, 0.40261996
    %v200 = vmul.f32 %v160, 0.40261996
    %v201 = vmul.f32 %v161, 0.40261996
    %v202 = vmul.f32 %v162, 0.40261996
    %v203 = vmul.f32 %v163, 0.40261996
    %v204 = vmul.f32 %v164, 0.40261996
    %v205 = vmul.f32 %v165, 0.40261996
    %v206 = vmul.f32 %v166, 0.40261996
    %v207 = vmul.f32 %v167, 0.40261996
    %v208 = vmul.f32 %v168, 0.40261996
    %v209 = vmul.f32 %v169, 0.40261996
    %v210 = vmul.f32 %v170, 0.40261996
    %v211 = vmul.f32 %v171, 0.40261996
    %v212 = vmul.f32 %v172, 0.40261996
    %v213 = vmul.f32 %v173, 0.40261996
    %v214 = vmul.f32 %v174, 0.40261996
    %v215 = vmul.f32 %v175, 0.40261996
    %v216 = vmul.f32 %v176, 0.40261996
    %v217 = vld [vmem:[#allocation2 + $0x6] sm:$0xff]
    %v218 = vld [vmem:[#allocation2 + $0xe] sm:$0xff]
    %v219 = vld [vmem:[#allocation2 + $0x26] sm:$0xff]
    %v220 = vld [vmem:[#allocation2 + $0x2e] sm:$0xff]
    %v221 = vld [vmem:[#allocation2 + $0x46] sm:$0xff]
    %v222 = vld [vmem:[#allocation2 + $0x4e] sm:$0xff]
    %v223 = vld [vmem:[#allocation2 + $0x66] sm:$0xff]
    %v224 = vld [vmem:[#allocation2 + $0x6e] sm:$0xff]
    %v225 = vld [vmem:[#allocation2 + $0x86] sm:$0xff]
    %v226 = vld [vmem:[#allocation2 + $0x8e] sm:$0xff]
    %v227 = vld [vmem:[#allocation2 + $0xa6] sm:$0xff]
    %v228 = vld [vmem:[#allocation2 + $0xae] sm:$0xff]
    %v229 = vld [vmem:[#allocation2 + $0xc6] sm:$0xff]
    %v230 = vld [vmem:[#allocation2 + $0xce] sm:$0xff]
    %v231 = vld [vmem:[#allocation2 + $0xe6] sm:$0xff]
    %v232 = vld [vmem:[#allocation2 + $0xee] sm:$0xff]
    %v233 = vld [vmem:[#allocation2 + $0x106] sm:$0xff]
    %v234 = vld [vmem:[#allocation2 + $0x10e] sm:$0xff]
    %v235 = vld [vmem:[#allocation2 + $0x126] sm:$0xff]
    %v236 = vld [vmem:[#allocation2 + $0x12e] sm:$0xff]
    %v237 = vld [vmem:[#allocation2 + $0x146] sm:$0xff]
    %v238 = vld [vmem:[#allocation2 + $0x14e] sm:$0xff]
    %v239 = vld [vmem:[#allocation2 + $0x166] sm:$0xff]
    %v240 = vld [vmem:[#allocation2 + $0x16e] sm:$0xff]
    %v241 = vld [vmem:[#allocation2 + $0x186] sm:$0xff]
    %v242 = vld [vmem:[#allocation2 + $0x18e] sm:$0xff]
    %v243 = vld [vmem:[#allocation2 + $0x1a6] sm:$0xff]
    %v244 = vld [vmem:[#allocation2 + $0x1ae] sm:$0xff]
    %v245 = vld [vmem:[#allocation2 + $0x1c6] sm:$0xff]
    %v246 = vld [vmem:[#allocation2 + $0x1ce] sm:$0xff]
    %v247 = vld [vmem:[#allocation2 + $0x1e6] sm:$0xff]
    %v248 = vld [vmem:[#allocation2 + $0x1ee] sm:$0xff]
    %v249 = vld [vmem:[#allocation2 + $0x206] sm:$0xff]
    %v250 = vld [vmem:[#allocation2 + $0x20e] sm:$0xff]
    %v251 = vld [vmem:[#allocation2 + $0x226] sm:$0xff]
    %v252 = vld [vmem:[#allocation2 + $0x22e] sm:$0xff]
    %v253 = vld [vmem:[#allocation2 + $0x246] sm:$0xff]
    %v254 = vld [vmem:[#allocation2 + $0x24e] sm:$0xff]
    %v255 = vld [vmem:[#allocation2 + $0x266] sm:$0xff]
    %v256 = vld [vmem:[#allocation2 + $0x26e] sm:$0xff]
    %v257 = vld [vmem:[#allocation2 + $0xa] sm:$0xff]
    %v258 = vld [vmem:[#allocation2 + $0x12] sm:$0xff]
    %v259 = vld [vmem:[#allocation2 + $0x2a] sm:$0xff]
    %v260 = vld [vmem:[#allocation2 + $0x32] sm:$0xff]
    %v261 = vld [vmem:[#allocation2 + $0x4a] sm:$0xff]
    %v262 = vld [vmem:[#allocation2 + $0x52] sm:$0xff]
    %v263 = vld [vmem:[#allocation2 + $0x6a] sm:$0xff]
    %v264 = vld [vmem:[#allocation2 + $0x72] sm:$0xff]
    %v265 = vld [vmem:[#allocation2 + $0x8a] sm:$0xff]
    %v266 = vld [vmem:[#allocation2 + $0x92] sm:$0xff]
    %v267 = vld [vmem:[#allocation2 + $0xaa] sm:$0xff]
    %v268 = vld [vmem:[#allocation2 + $0xb2] sm:$0xff]
    %v269 = vld [vmem:[#allocation2 + $0xca] sm:$0xff]
    %v270 = vld [vmem:[#allocation2 + $0xd2] sm:$0xff]
    %v271 = vld [vmem:[#allocation2 + $0xea] sm:$0xff]
    %v272 = vld [vmem:[#allocation2 + $0xf2] sm:$0xff]
    %v273 = vld [vmem:[#allocation2 + $0x10a] sm:$0xff]
    %v274 = vld [vmem:[#allocation2 + $0x112] sm:$0xff]
    %v275 = vld [vmem:[#allocation2 + $0x12a] sm:$0xff]
    %v276 = vld [vmem:[#allocation2 + $0x132] sm:$0xff]
    %v277 = vld [vmem:[#allocation2 + $0x14a] sm:$0xff]
    %v278 = vld [vmem:[#allocation2 + $0x152] sm:$0xff]
    %v279 = vld [vmem:[#allocation2 + $0x16a] sm:$0xff]
    %v280 = vld [vmem:[#allocation2 + $0x172] sm:$0xff]
    %v281 = vld [vmem:[#allocation2 + $0x18a] sm:$0xff]
    %v282 = vld [vmem:[#allocation2 + $0x192] sm:$0xff]
    %v283 = vld [vmem:[#allocation2 + $0x1aa] sm:$0xff]
    %v284 = vld [vmem:[#allocation2 + $0x1b2] sm:$0xff]
    %v285 = vld [vmem:[#allocation2 + $0x1ca] sm:$0xff]
    %v286 = vld [vmem:[#allocation2 + $0x1d2] sm:$0xff]
    %v287 = vld [vmem:[#allocation2 + $0x1ea] sm:$0xff]
    %v288 = vld [vmem:[#allocation2 + $0x1f2] sm:$0xff]
    %v289 = vld [vmem:[#allocation2 + $0x20a] sm:$0xff]
    %v290 = vld [vmem:[#allocation2 + $0x212] sm:$0xff]
    %v291 = vld [vmem:[#allocation2 + $0x22a] sm:$0xff]
    %v292 = vld [vmem:[#allocation2 + $0x232] sm:$0xff]
    %v293 = vld [vmem:[#allocation2 + $0x24a] sm:$0xff]
    %v294 = vld [vmem:[#allocation2 + $0x252] sm:$0xff]
    %v295 = vld [vmem:[#allocation2 + $0x26a] sm:$0xff]
    %v296 = vld [vmem:[#allocation2 + $0x272] sm:$0xff]
    %v297 = vadd.f32 %v217, %v257
    %v298 = vadd.f32 %v218, %v258
    %v299 = vadd.f32 %v219, %v259
    %v300 = vadd.f32 %v220, %v260
    %v301 = vadd.f32 %v221, %v261
    %v302 = vadd.f32 %v222, %v262
    %v303 = vadd.f32 %v223, %v263
    %v304 = vadd.f32 %v224, %v264
    %v305 = vadd.f32 %v225, %v265
    %v306 = vadd.f32 %v226, %v266
    %v307 = vadd.f32 %v227, %v267
    %v308 = vadd.f32 %v228, %v268
    %v309 = vadd.f32 %v229, %v269
    %v310 = vadd.f32 %v230, %v270
    %v311 = vadd.f32 %v231, %v271
    %v312 = vadd.f32 %v232, %v272
    %v313 = vadd.f32 %v233, %v273
    %v314 = vadd.f32 %v234, %v274
    %v315 = vadd.f32 %v235, %v275
    %v316 = vadd.f32 %v236, %v276
    %v317 = vadd.f32 %v237, %v277
    %v318 = vadd.f32 %v238, %v278
    %v319 = vadd.f32 %v239, %v279
    %v320 = vadd.f32 %v240, %v280
    %v321 = vadd.f32 %v241, %v281
    %v322 = vadd.f32 %v242, %v282
    %v323 = vadd.f32 %v243, %v283
    %v324 = vadd.f32 %v244, %v284
    %v325 = vadd.f32 %v245, %v285
    %v326 = vadd.f32 %v246, %v286
    %v327 = vadd.f32 %v247, %v287
    %v328 = vadd.f32 %v248, %v288
    %v329 = vadd.f32 %v249, %v289
    %v330 = vadd.f32 %v250, %v290
    %v331 = vadd.f32 %v251, %v291
    %v332 = vadd.f32 %v252, %v292
    %v333 = vadd.f32 %v253, %v293
    %v334 = vadd.f32 %v254, %v294
    %v335 = vadd.f32 %v255, %v295
    %v336 = vadd.f32 %v256, %v296
    %v337 = vmul.f32 %v297, 0.054488685
    %v338 = vmul.f32 %v298, 0.054488685
    %v339 = vmul.f32 %v299, 0.054488685
    %v340 = vmul.f32 %v300, 0.054488685
    %v341 = vmul.f32 %v301, 0.054488685
    %v342 = vmul.f32 %v302, 0.054488685
    %v343 = vmul.f32 %v303, 0.054488685
    %v344 = vmul.f32 %v304, 0.054488685
    %v345 = vmul.f32 %v305, 0.054488685
    %v346 = vmul.f32 %v306, 0.054488685
    %v347 = vmul.f32 %v307, 0.054488685
    %v348 = vmul.f32 %v308, 0.054488685
    %v349 = vmul.f32 %v309, 0.054488685
    %v350 = vmul.f32 %v310, 0.054488685
    %v351 = vmul.f32 %v311, 0.054488685
    %v352 = vmul.f32 %v312, 0.054488685
    %v353 = vmul.f32 %v313, 0.054488685
    %v354 = vmul.f32 %v314, 0.054488685
    %v355 = vmul.f32 %v315, 0.054488685
    %v356 = vmul.f32 %v316, 0.054488685
    %v357 = vmul.f32 %v317, 0.054488685
    %v358 = vmul.f32 %v318, 0.054488685
    %v359 = vmul.f32 %v319, 0.054488685
    %v360 = vmul.f32 %v320, 0.054488685
    %v361 = vmul.f32 %v321, 0.054488685
    %v362 = vmul.f32 %v322, 0.054488685
    %v363 = vmul.f32 %v323, 0.054488685
    %v364 = vmul.f32 %v324, 0.054488685
    %v365 = vmul.f32 %v325, 0.054488685
    %v366 = vmul.f32 %v326, 0.054488685
    %v367 = vmul.f32 %v327, 0.054488685
    %v368 = vmul.f32 %v328, 0.054488685
    %v369 = vmul.f32 %v329, 0.054488685
    %v370 = vmul.f32 %v330, 0.054488685
    %v371 = vmul.f32 %v331, 0.054488685
    %v372 = vmul.f32 %v332, 0.054488685
    %v373 = vmul.f32 %v333, 0.054488685
    %v374 = vmul.f32 %v334, 0.054488685
    %v375 = vmul.f32 %v335, 0.054488685
    %v376 = vmul.f32 %v336, 0.054488685
    %v377 = vadd.f32 %v177, %v337
    %v378 = vadd.f32 %v178, %v338
    %v379 = vadd.f32 %v179, %v339
    %v380 = vadd.f32 %v180, %v340
    %v381 = vadd.f32 %v181, %v341
    %v382 = vadd.f32 %v182, %v342
    %v383 = vadd.f32 %v183, %v343
    %v384 = vadd.f32 %v184, %v344
    %v385 = vadd.f32 %v185, %v345
    %v386 = vadd.f32 %v186, %v346
    %v387 = vadd.f32 %v187, %v347
    %v388 = vadd.f32 %v188, %v348
    %v389 = vadd.f32 %v189, %v349
    %v390 = vadd.f32 %v190, %v350
    %v391 = vadd.f32 %v191, %v351
    %v392 = vadd.f32 %v192, %v352
    %v393 = vadd.f32 %v193, %v353
    %v394 = vadd.f32 %v194, %v354
    %v395 = vadd.f32 %v195, %v355
    %v396 = vadd.f32 %v196, %v356
    %v397 = vadd.f32 %v197, %v357
    %v398 = vadd.f32 %v198, %v358
    %v399 = vadd.f32 %v199, %v359
    %v400 = vadd.f32 %v200, %v360
    %v401 = vadd.f32 %v201, %v361
    %v402 = vadd.f32 %v202, %v362
    %v403 = vadd.f32 %v203, %v363
    %v404 = vadd.f32 %v204, %v364
    %v405 = vadd.f32 %v205, %v365
    %v406 = vadd.f32 %v206, %v366
    %v407 = vadd.f32 %v207, %v367
    %v408 = vadd.f32 %v208, %v368
    %v409 = vadd.f32 %v209, %v369
    %v410 = vadd.f32 %v210, %v370
    %v411 = vadd.f32 %v211, %v371
    %v412 = vadd.f32 %v212, %v372
    %v413 = vadd.f32 %v213, %v373
    %v414 = vadd.f32 %v214, %v374
    %v415 = vadd.f32 %v215, %v375
    %v416 = vadd.f32 %v216, %v376
    %v417 = vld [vmem:[#allocation2 + $0x7] sm:$0xff]
    %v418 = vld [vmem:[#allocation2 + $0xf] sm:$0xff]
    %v419 = vld [vmem:[#allocation2 + $0x27] sm:$0xff]
    %v420 = vld [vmem:[#allocation2 + $0x2f] sm:$0xff]
    %v421 = vld [vmem:[#allocation2 + $0x47] sm:$0xff]
    %v422 = vld [vmem:[#allocation2 + $0x4f] sm:$0xff]
    %v423 = vld [vmem:[#allocation2 + $0x67] sm:$0xff]
    %v424 = vld [vmem:[#allocation2 + $0x6f] sm:$0xff]
    %v425 = vld [vmem:[#allocation2 + $0x87] sm:$0xff]
    %v426 = vld [vmem:[#allocation2 + $0x8f] sm:$0xff]
    %v427 = vld [vmem:[#allocation2 + $0xa7] sm:$0xff]
    %v428 = vld [vmem:[#allocation2 + $0xaf] sm:$0xff]
    %v429 = vld [vmem:[#allocation2 + $0xc7] sm:$0xff]
    %v430 = vld [vmem:[#allocation2 + $0xcf] sm:$0xff]
    %v431 = vld [vmem:[#allocation2 + $0xe7] sm:$0xff]
    %v432 = vld [vmem:[#allocation2 + $0xef] sm:$0xff]
    %v433 = vld [vmem:[#allocation2 + $0x107] sm:$0xff]
    %v434 = vld [vmem:[#allocation2 + $0x10f] sm:$0xff]
    %v435 = vld [vmem:[#allocation2 + $0x127] sm:$0xff]
    %v436 = vld [vmem:[#allocation2 + $0x12f] sm:$0xff]
    %v437 = vld [vmem:[#allocation2 + $0x147] sm:$0xff]
    %v438 = vld [vmem:[#allocation2 + $0x14f] sm:$0xff]
    %v439 = vld [vmem:[#allocation2 + $0x167] sm:$0xff]
    %v440 = vld [vmem:[#allocation2 + $0x16f] sm:$0xff]
    %v441 = vld [vmem:[#allocation2 + $0x187] sm:$0xff]
    %v442 = vld [vmem:[#allocation2 + $0x18f] sm:$0xff]
    %v443 = vld [vmem:[#allocation2 + $0x1a7] sm:$0xff]
    %v444 = vld [vmem:[#allocation2 + $0x1af] sm:$0xff]
    %v445 = vld [vmem:[#allocation2 + $0x1c7] sm:$0xff]
    %v446 = vld [vmem:[#allocation2 + $0x1cf] sm:$0xff]
    %v447 = vld [vmem:[#allocation2 + $0x1e7] sm:$0xff]
    %v448 = vld [vmem:[#allocation2 + $0x1ef] sm:$0xff]
    %v449 = vld [vmem:[#allocation2 + $0x207] sm:$0xff]
    %v450 = vld [vmem:[#allocation2 + $0x20f] sm:$0xff]
    %v451 = vld [vmem:[#allocation2 + $0x227] sm:$0xff]
    %v452 = vld [vmem:[#allocation2 + $0x22f] sm:$0xff]
    %v453 = vld [vmem:[#allocation2 + $0x247] sm:$0xff]
    %v454 = vld [vmem:[#allocation2 + $0x24f] sm:$0xff]
    %v455 = vld [vmem:[#allocation2 + $0x267] sm:$0xff]
    %v456 = vld [vmem:[#allocation2 + $0x26f] sm:$0xff]
    %v457 = vld [vmem:[#allocation2 + $0x9] sm:$0xff]
    %v458 = vld [vmem:[#allocation2 + $0x11] sm:$0xff]
    %v459 = vld [vmem:[#allocation2 + $0x29] sm:$0xff]
    %v460 = vld [vmem:[#allocation2 + $0x31] sm:$0xff]
    %v461 = vld [vmem:[#allocation2 + $0x49] sm:$0xff]
    %v462 = vld [vmem:[#allocation2 + $0x51] sm:$0xff]
    %v463 = vld [vmem:[#allocation2 + $0x69] sm:$0xff]
    %v464 = vld [vmem:[#allocation2 + $0x71] sm:$0xff]
    %v465 = vld [vmem:[#allocation2 + $0x89] sm:$0xff]
    %v466 = vld [vmem:[#allocation2 + $0x91] sm:$0xff]
    %v467 = vld [vmem:[#allocation2 + $0xa9] sm:$0xff]
    %v468 = vld [vmem:[#allocation2 + $0xb1] sm:$0xff]
    %v469 = vld [vmem:[#allocation2 + $0xc9] sm:$0xff]
    %v470 = vld [vmem:[#allocation2 + $0xd1] sm:$0xff]
    %v471 = vld [vmem:[#allocation2 + $0xe9] sm:$0xff]
    %v472 = vld [vmem:[#allocation2 + $0xf1] sm:$0xff]
    %v473 = vld [vmem:[#allocation2 + $0x109] sm:$0xff]
    %v474 = vld [vmem:[#allocation2 + $0x111] sm:$0xff]
    %v475 = vld [vmem:[#allocation2 + $0x129] sm:$0xff]
    %v476 = vld [vmem:[#allocation2 + $0x131] sm:$0xff]
    %v477 = vld [vmem:[#allocation2 + $0x149] sm:$0xff]
    %v478 = vld [vmem:[#allocation2 + $0x151] sm:$0xff]
    %v479 = vld [vmem:[#allocation2 + $0x169] sm:$0xff]
    %v480 = vld [vmem:[#allocation2 + $0x171] sm:$0xff]
    %v481 = vld [vmem:[#allocation2 + $0x189] sm:$0xff]
    %v482 = vld [vmem:[#allocation2 + $0x191] sm:$0xff]
    %v483 = vld [vmem:[#allocation2 + $0x1a9] sm:$0xff]
    %v484 = vld [vmem:[#allocation2 + $0x1b1] sm:$0xff]
    %v485 = vld [vmem:[#allocation2 + $0x1c9] sm:$0xff]
    %v486 = vld [vmem:[#allocation2 + $0x1d1] sm:$0xff]
    %v487 = vld [vmem:[#allocation2 + $0x1e9] sm:$0xff]
    %v488 = vld [vmem:[#allocation2 + $0x1f1] sm:$0xff]
    %v489 = vld [vmem:[#allocation2 + $0x209] sm:$0xff]
    %v490 = vld [vmem:[#allocation2 + $0x211] sm:$0xff]
    %v491 = vld [vmem:[#allocation2 + $0x229] sm:$0xff]
    %v492 = vld [vmem:[#allocation2 + $0x231] sm:$0xff]
    %v493 = vld [vmem:[#allocation2 + $0x249] sm:$0xff]
    %v494 = vld [vmem:[#allocation2 + $0x251] sm:$0xff]
    %v495 = vld [vmem:[#allocation2 + $0x269] sm:$0xff]
    %v496 = vld [vmem:[#allocation2 + $0x271] sm:$0xff]
    %v497 = vadd.f32 %v417, %v457
    %v498 = vadd.f32 %v418, %v458
    %v499 = vadd.f32 %v419, %v459
    %v500 = vadd.f32 %v420, %v460
    %v501 = vadd.f32 %v421, %v461
    %v502 = vadd.f32 %v422, %v462
    %v503 = vadd.f32 %v423, %v463
    %v504 = vadd.f32 %v424, %v464
    %v505 = vadd.f32 %v425, %v465
    %v506 = vadd.f32 %v426, %v466
    %v507 = vadd.f32 %v427, %v467
    %v508 = vadd.f32 %v428, %v468
    %v509 = vadd.f32 %v429, %v469
    %v510 = vadd.f32 %v430, %v470
    %v511 = vadd.f32 %v431, %v471
    %v512 = vadd.f32 %v432, %v472
    %v513 = vadd.f32 %v433, %v473
    %v514 = vadd.f32 %v434, %v474
    %v515 = vadd.f32 %v435, %v475
    %v516 = vadd.f32 %v436, %v476
    %v517 = vadd.f32 %v437, %v477
    %v518 = vadd.f32 %v438, %v478
    %v519 = vadd.f32 %v439, %v479
    %v520 = vadd.f32 %v440, %v480
    %v521 = vadd.f32 %v441, %v481
    %v522 = vadd.f32 %v442, %v482
    %v523 = vadd.f32 %v443, %v483
    %v524 = vadd.f32 %v444, %v484
    %v525 = vadd.f32 %v445, %v485
    %v526 = vadd.f32 %v446, %v486
    %v527 = vadd.f32 %v447, %v487
    %v528 = vadd.f32 %v448, %v488
    %v529 = vadd.f32 %v449, %v489
    %v530 = vadd.f32 %v450, %v490
    %v531 = vadd.f32 %v451, %v491
    %v532 = vadd.f32 %v452, %v492
    %v533 = vadd.f32 %v453, %v493
    %v534 = vadd.f32 %v454, %v494
    %v535 = vadd.f32 %v455, %v495
    %v536 = vadd.f32 %v456, %v496
    %v537 = vmul.f32 %v497, 0.24420135
    %v538 = vmul.f32 %v498, 0.24420135
    %v539 = vmul.f32 %v499, 0.24420135
    %v540 = vmul.f32 %v500, 0.24420135
    %v541 = vmul.f32 %v501, 0.24420135
    %v542 = vmul.f32 %v502, 0.24420135
    %v543 = vmul.f32 %v503, 0.24420135
    %v544 = vmul.f32 %v504, 0.24420135
    %v545 = vmul.f32 %v505, 0.24420135
    %v546 = vmul.f32 %v506, 0.24420135
    %v547 = vmul.f32 %v507, 0.24420135
    %v548 = vmul.f32 %v508, 0.24420135
    %v549 = vmul.f32 %v509, 0.24420135
    %v550 = vmul.f32 %v510, 0.24420135
    %v551 = vmul.f32 %v511, 0.24420135
    %v552 = vmul.f32 %v512, 0.24420135
    %v553 = vmul.f32 %v513, 0.24420135
    %v554 = vmul.f32 %v514, 0.24420135
    %v555 = vmul.f32 %v515, 0.24420135
    %v556 = vmul.f32 %v516, 0.24420135
    %v557 = vmul.f32 %v517, 0.24420135
    %v558 = vmul.f32 %v518, 0.24420135
    %v559 = vmul.f32 %v519, 0.24420135
    %v560 = vmul.f32 %v520, 0.24420135
    %v561 = vmul.f32 %v521, 0.24420135
    %v562 = vmul.f32 %v522, 0.24420135
    %v563 = vmul.f32 %v523, 0.24420135
    %v564 = vmul.f32 %v524, 0.24420135
    %v565 = vmul.f32 %v525, 0.24420135
    %v566 = vmul.f32 %v526, 0.24420135
    %v567 = vmul.f32 %v527, 0.24420135
    %v568 = vmul.f32 %v528, 0.24420135
    %v569 = vmul.f32 %v529, 0.24420135
    %v570 = vmul.f32 %v530, 0.24420135
    %v571 = vmul.f32 %v531, 0.24420135
    %v572 = vmul.f32 %v532, 0.24420135
    %v573 = vmul.f32 %v533, 0.24420135
    %v574 = vmul.f32 %v534, 0.24420135
    %v575 = vmul.f32 %v535, 0.24420135
    %v576 = vmul.f32 %v536, 0.24420135
    %v577 = vadd.f32 %v377, %v537
    %v578 = vadd.f32 %v378, %v538
    %v579 = vadd.f32 %v379, %v539
    %v580 = vadd.f32 %v380, %v540
    %v581 = vadd.f32 %v381, %v541
    %v582 = vadd.f32 %v382, %v542
    %v583 = vadd.f32 %v383, %v543
    %v584 = vadd.f32 %v384, %v544
    %v585 = vadd.f32 %v385, %v545
    %v586 = vadd.f32 %v386, %v546
    %v587 = vadd.f32 %v387, %v547
    %v588 = vadd.f32 %v388, %v548
    %v589 = vadd.f32 %v389, %v549
    %v590 = vadd.f32 %v390, %v550
    %v591 = vadd.f32 %v391, %v551
    %v592 = vadd.f32 %v392, %v552
    %v593 = vadd.f32 %v393, %v553
    %v594 = vadd.f32 %v394, %v554
    %v595 = vadd.f32 %v395, %v555
    %v596 = vadd.f32 %v396, %v556
    %v597 = vadd.f32 %v397, %v557
    %v598 = vadd.f32 %v398, %v558
    %v599 = vadd.f32 %v399, %v559
    %v600 = vadd.f32 %v400, %v560
    %v601 = vadd.f32 %v401, %v561
    %v602 = vadd.f32 %v402, %v562
    %v603 = vadd.f32 %v403, %v563
    %v604 = vadd.f32 %v404, %v564
    %v605 = vadd.f32 %v405, %v565
    %v606 = vadd.f32 %v406, %v566
    %v607 = vadd.f32 %v407, %v567
    %v608 = vadd.f32 %v408, %v568
    %v609 = vadd.f32 %v409, %v569
    %v610 = vadd.f32 %v410, %v570
    %v611 = vadd.f32 %v411, %v571
    %v612 = vadd.f32 %v412, %v572
    %v613 = vadd.f32 %v413, %v573
    %v614 = vadd.f32 %v414, %v574
    %v615 = vadd.f32 %v415, %v575
    %v616 = vadd.f32 %v416, %v576
    %v617 = vmul.f32 %v581, 0.40261996
    %v618 = vmul.f32 %v582, 0.40261996
    %v619 = vmul.f32 %v583, 0.40261996
    %v620 = vmul.f32 %v584, 0.40261996
    %v621 = vmul.f32 %v585, 0.40261996
    %v622 = vmul.f32 %v586, 0.40261996
    %v623 = vmul.f32 %v587, 0.40261996
    %v624 = vmul.f32 %v588, 0.40261996
    %v625 = vmul.f32 %v589, 0.40261996
    %v626 = vmul.f32 %v590, 0.40261996
    %v627 = vmul.f32 %v591, 0.40261996
    %v628 = vmul.f32 %v592, 0.40261996
    %v629 = vmul.f32 %v593, 0.40261996
    %v630 = vmul.f32 %v594, 0.40261996
    %v631 = vmul.f32 %v595, 0.40261996
    %v632 = vmul.f32 %v596, 0.40261996
    %v633 = vmul.f32 %v597, 0.40261996
    %v634 = vmul.f32 %v598, 0.40261996
    %v635 = vmul.f32 %v599, 0.40261996
    %v636 = vmul.f32 %v600, 0.40261996
    %v637 = vmul.f32 %v601, 0.40261996
    %v638 = vmul.f32 %v602, 0.40261996
    %v639 = vmul.f32 %v603, 0.40261996
    %v640 = vmul.f32 %v604, 0.40261996
    %v641 = vmul.f32 %v605, 0.40261996
    %v642 = vmul.f32 %v606, 0.40261996
    %v643 = vmul.f32 %v607, 0.40261996
    %v644 = vmul.f32 %v608, 0.40261996
    %v645 = vmul.f32 %v609, 0.40261996
    %v646 = vmul.f32 %v610, 0.40261996
    %v647 = vmul.f32 %v611, 0.40261996
    %v648 = vmul.f32 %v612, 0.40261996
    %v649 = vadd.f32 %v577, %v585
    %v650 = vadd.f32 %v578, %v586
    %v651 = vadd.f32 %v579, %v587
    %v652 = vadd.f32 %v580, %v588
    %v653 = vadd.f32 %v581, %v589
    %v654 = vadd.f32 %v582, %v590
    %v655 = vadd.f32 %v583, %v591
    %v656 = vadd.f32 %v584, %v592
    %v657 = vadd.f32 %v585, %v593
    %v658 = vadd.f32 %v586, %v594
    %v659 = vadd.f32 %v587, %v595
    %v660 = vadd.f32 %v588, %v596
    %v661 = vadd.f32 %v589, %v597
    %v662 = vadd.f32 %v590, %v598
    %v663 = vadd.f32 %v591, %v599
    %v664 = vadd.f32 %v592, %v600
    %v665 = vadd.f32 %v593, %v601
    %v666 = vadd.f32 %v594, %v602
    %v667 = vadd.f32 %v595, %v603
    %v668 = vadd.f32 %v596, %v604
    %v669 = vadd.f32 %v597, %v605
    %v670 = vadd.f32 %v598, %v606
    %v671 = vadd.f32 %v599, %v607
    %v672 = vadd.f32 %v600, %v608
    %v673 = vadd.f32 %v601, %v609
    %v674 = vadd.f32 %v602, %v610
    %v675 = vadd.f32 %v603, %v611
    %v676 = vadd.f32 %v604, %v612
    %v677 = vadd.f32 %v605, %v613
    %v678 = vadd.f32 %v606, %v614
    %v679 = vadd.f32 %v607, %v615
    %v680 = vadd.f32 %v608, %v616
    %v681 = vmul.f32 %v649, 0.054488685
    %v682 = vmul.f32 %v650, 0.054488685
    %v683 = vmul.f32 %v651, 0.054488685
    %v684 = vmul.f32 %v652, 0.054488685
    %v685 = vmul.f32 %v653, 0.054488685
    %v686 = vmul.f32 %v654, 0.054488685
    %v687 = vmul.f32 %v655, 0.054488685
    %v688 = vmul.f32 %v656, 0.054488685
    %v689 = vmul.f32 %v657, 0.054488685
    %v690 = vmul.f32 %v658, 0.054488685
    %v691 = vmul.f32 %v659, 0.054488685
    %v692 = vmul.f32 %v660, 0.054488685
    %v693 = vmul.f32 %v661, 0.054488685
    %v694 = vmul.f32 %v662, 0.054488685
    %v695 = vmul.f32 %v663, 0.054488685
    %v696 = vmul.f32 %v664, 0.054488685
    %v697 = vmul.f32 %v665, 0.054488685
    %v698 = vmul.f32 %v666, 0.054488685
    %v699 = vmul.f32 %v667, 0.054488685
    %v700 = vmul.f32 %v668, 0.054488685
    %v701 = vmul.f32 %v669, 0.054488685
    %v702 = vmul.f32 %v670, 0.054488685
    %v703 = vmul.f32 %v671, 0.054488685
    %v704 = vmul.f32 %v672, 0.054488685
    %v705 = vmul.f32 %v673, 0.054488685
    %v706 = vmul.f32 %v674, 0.054488685
    %v707 = vmul.f32 %v675, 0.054488685
    %v708 = vmul.f32 %v676, 0.054488685
    %v709 = vmul.f32 %v677, 0.054488685
    %v710 = vmul.f32 %v678, 0.054488685
    %v711 = vmul.f32 %v679, 0.054488685
    %v712 = vmul.f32 %v680, 0.054488685
    %v713 = vadd.f32 %v617, %v681
    %v714 = vadd.f32 %v618, %v682
    %v715 = vadd.f32 %v619, %v683
    %v716 = vadd.f32 %v620, %v684
    %v717 = vadd.f32 %v621, %v685
    %v718 = vadd.f32 %v622, %v686
    %v719 = vadd.f32 %v623, %v687
    %v720 = vadd.f32 %v624, %v688
    %v721 = vadd.f32 %v625, %v689
    %v722 = vadd.f32 %v626, %v690
    %v723 = vadd.f32 %v627, %v691
    %v724 = vadd.f32 %v628, %v692
    %v725 = vadd.f32 %v629, %v693
    %v726 = vadd.f32 %v630, %v694
    %v727 = vadd.f32 %v631, %v695
    %v728 = vadd.f32 %v632, %v696
    %v729 = vadd.f32 %v633, %v697
    %v730 = vadd.f32 %v634, %v698
    %v731 = vadd.f32 %v635, %v699
    %v732 = vadd.f32 %v636, %v700
    %v733 = vadd.f32 %v637, %v701
    %v734 = vadd.f32 %v638, %v702
    %v735 = vadd.f32 %v639, %v703
    %v736 = vadd.f32 %v640, %v704
    %v737 = vadd.f32 %v641, %v705
    %v738 = vadd.f32 %v642, %v706
    %v739 = vadd.f32 %v643, %v707
    %v740 = vadd.f32 %v644, %v708
    %v741 = vadd.f32 %v645, %v709
    %v742 = vadd.f32 %v646, %v710
    %v743 = vadd.f32 %v647, %v711
    %v744 = vadd.f32 %v648, %v712
    %v745 = vadd.f32 %v579, %v583
    %v746 = vadd.f32 %v580, %v584
    %v747 = vadd.f32 %v581, %v585
    %v748 = vadd.f32 %v582, %v586
    %v749 = vadd.f32 %v583, %v587
    %v750 = vadd.f32 %v584, %v588
    %v751 = vadd.f32 %v585, %v589
    %v752 = vadd.f32 %v586, %v590
    %v753 = vadd.f32 %v587, %v591
    %v754 = vadd.f32 %v588, %v592
    %v755 = vadd.f32 %v589, %v593
    %v756 = vadd.f32 %v590, %v594
    %v757 = vadd.f32 %v591, %v595
    %v758 = vadd.f32 %v592, %v596
    %v759 = vadd.f32 %v593, %v597
    %v760 = vadd.f32 %v594, %v598
    %v761 = vadd.f32 %v595, %v599
    %v762 = vadd.f32 %v596, %v600
    %v763 = vadd.f32 %v597, %v601
    %v764 = vadd.f32 %v598, %v602
    %v765 = vadd.f32 %v599, %v603
    %v766 = vadd.f32 %v600, %v604
    %v767 = vadd.f32 %v601, %v605
    %v768 = vadd.f32 %v602, %v606
    %v769 = vadd.f32 %v603, %v607
    %v770 = vadd.f32 %v604, %v608
    %v771 = vadd.f32 %v605, %v609
    %v772 = vadd.f32 %v606, %v610
    %v773 = vadd.f32 %v607, %v611
    %v774 = vadd.f32 %v608, %v612
    %v775 = vadd.f32 %v609, %v613
    %v776 = vadd.f32 %v610, %v614
    %v777 = vmul.f32 %v745, 0.24420135
    %v778 = vmul.f32 %v746, 0.24420135
    %v779 = vmul.f32 %v747, 0.24420135
    %v780 = vmul.f32 %v748, 0.24420135
    %v781 = vmul.f32 %v749, 0.24420135
    %v782 = vmul.f32 %v750, 0.24420135
    %v783 = vmul.f32 %v751, 0.24420135
    %v784 = vmul.f32 %v752, 0.24420135
    %v785 = vmul.f32 %v753, 0.24420135
    %v786 = vmul.f32 %v754, 0.24420135
    %v787 = vmul.f32 %v755, 0.24420135
    %v788 = vmul.f32 %v756, 0.24420135
    %v789 = vmul.f32 %v757, 0.24420135
    %v790 = vmul.f32 %v758, 0.24420135
    %v791 = vmul.f32 %v759, 0.24420135
    %v792 = vmul.f32 %v760, 0.24420135
    %v793 = vmul.f32 %v761, 0.24420135
    %v794 = vmul.f32 %v762, 0.24420135
    %v795 = vmul.f32 %v763, 0.24420135
    %v796 = vmul.f32 %v764, 0.24420135
    %v797 = vmul.f32 %v765, 0.24420135
    %v798 = vmul.f32 %v766, 0.24420135
    %v799 = vmul.f32 %v767, 0.24420135
    %v800 = vmul.f32 %v768, 0.24420135
    %v801 = vmul.f32 %v769, 0.24420135
    %v802 = vmul.f32 %v770, 0.24420135
    %v803 = vmul.f32 %v771, 0.24420135
    %v804 = vmul.f32 %v772, 0.24420135
    %v805 = vmul.f32 %v773, 0.24420135
    %v806 = vmul.f32 %v774, 0.24420135
    %v807 = vmul.f32 %v775, 0.24420135
    %v808 = vmul.f32 %v776, 0.24420135
    %v809 = vadd.f32 %v713, %v777
    %v810 = vadd.f32 %v714, %v778
    %v811 = vadd.f32 %v715, %v779
    %v812 = vadd.f32 %v716, %v780
    %v813 = vadd.f32 %v717, %v781
    %v814 = vadd.f32 %v718, %v782
    %v815 = vadd.f32 %v719, %v783
    %v816 = vadd.f32 %v720, %v784
    %v817 = vadd.f32 %v721, %v785
    %v818 = vadd.f32 %v722, %v786
    %v819 = vadd.f32 %v723, %v787
    %v820 = vadd.f32 %v724, %v788
    %v821 = vadd.f32 %v725, %v789
    %v822 = vadd.f32 %v726, %v790
    %v823 = vadd.f32 %v727, %v791
    %v824 = vadd.f32 %v728, %v792
    %v825 = vadd.f32 %v729, %v793
    %v826 = vadd.f32 %v730, %v794
    %v827 = vadd.f32 %v731, %v795
    %v828 = vadd.f32 %v732, %v796
    %v829 = vadd.f32 %v733, %v797
    %v830 = vadd.f32 %v734, %v798
    %v831 = vadd.f32 %v735, %v799
    %v832 = vadd.f32 %v736, %v800
    %v833 = vadd.f32 %v737, %v801
    %v834 = vadd.f32 %v738, %v802
    %v835 = vadd.f32 %v739, %v803
    %v836 = vadd.f32 %v740, %v804
    %v837 = vadd.f32 %v741, %v805
    %v838 = vadd.f32 %v742, %v806
    %v839 = vadd.f32 %v743, %v807
    %v840 = vadd.f32 %v744, %v808
    %841 = vst [vmem:[#allocation6] sm:$0xff] %v809
    %842 = vst [vmem:[#allocation6 + $0x8] sm:$0xff] %v810
    %843 = vst [vmem:[#allocation6 + $0x10] sm:$0xff] %v811
    %844 = vst [vmem:[#allocation6 + $0x18] sm:$0xff] %v812
    %845 = vst [vmem:[#allocation6 + $0x20] sm:$0xff] %v813
    %846 = vst [vmem:[#allocation6 + $0x28] sm:$0xff] %v814
    %847 = vst [vmem:[#allocation6 + $0x30] sm:$0xff] %v815
    %848 = vst [vmem:[#allocation6 + $0x38] sm:$0xff] %v816
    %849 = vst [vmem:[#allocation6 + $0x40] sm:$0xff] %v817
    %850 = vst [vmem:[#allocation6 + $0x48] sm:$0xff] %v818
    %851 = vst [vmem:[#allocation6 + $0x50] sm:$0xff] %v819
    %852 = vst [vmem:[#allocation6 + $0x58] sm:$0xff] %v820
    %853 = vst [vmem:[#allocation6 + $0x60] sm:$0xff] %v821
    %854 = vst [vmem:[#allocation6 + $0x68] sm:$0xff] %v822
    %855 = vst [vmem:[#allocation6 + $0x70] sm:$0xff] %v823
    %856 = vst [vmem:[#allocation6 + $0x78] sm:$0xff] %v824
    %857 = vst [vmem:[#allocation6 + $0x80] sm:$0xff] %v825
    %858 = vst [vmem:[#allocation6 + $0x88] sm:$0xff] %v826
    %859 = vst [vmem:[#allocation6 + $0x90] sm:$0xff] %v827
    %860 = vst [vmem:[#allocation6 + $0x98] sm:$0xff] %v828
    %861 = vst [vmem:[#allocation6 + $0xa0] sm:$0xff] %v829
    %862 = vst [vmem:[#allocation6 + $0xa8] sm:$0xff] %v830
    %863 = vst [vmem:[#allocation6 + $0xb0] sm:$0xff] %v831
    %864 = vst [vmem:[#allocation6 + $0xb8] sm:$0xff] %v832
    %865 = vst [vmem:[#allocation6 + $0xc0] sm:$0xff] %v833
    %866 = vst [vmem:[#allocation6 + $0xc8] sm:$0xff] %v834
    %867 = vst [vmem:[#allocation6 + $0xd0] sm:$0xff] %v835
    %868 = vst [vmem:[#allocation6 + $0xd8] sm:$0xff] %v836
    %869 = vst [vmem:[#allocation6 + $0xe0] sm:$0xff] %v837
    %870 = vst [vmem:[#allocation6 + $0xe8] sm:$0xff] %v838
    %871 = vst [vmem:[#allocation6 + $0xf0] sm:$0xff] %v839
    %872 = vst [vmem:[#allocation6 + $0xf8] sm:$0xff] %v840
    // Predicated region
    $region10: #{tpu_custom_call.1} parent=1 // pred_check
      _
    $region11: #{tpu_custom_call.1} parent=1 // pred_check_branch
      %874 = sbr.rel (0) target = $region13
    $region12: #{tpu_custom_call.1} parent=1 // pred_region
      %s876 = ssub.s32 4096, 4096
      %877 = vsyncadd [#allocation5], %s876
      %s878 = sshll.u32 [#allocation6], 4
      %s879 = int_to_ptr.vmem [resolvable:$true] %s878
      %884 = dma.vmem_to_hbm [thread:$0]  %s879, 4096, %s1, [#allocation5], 128, 128, 8
    $region13: #{tpu_custom_call.1} parent=1 // pred_fallthru
      _
    // Predicated region
    $region14: #{tpu_custom_call.1} parent=1 // pred_check
      _
    $region15: #{tpu_custom_call.1} parent=1 // pred_check_branch
      %886 = sbr.rel (0) target = $region17
    $region16: #{tpu_custom_call.1} parent=1 // pred_region
      %887 = dma.done [#allocation5], 4096
    $region17: #{tpu_custom_call.1} parent=1 // pred_fallthru
      _
    %888 = vsyncpa [#allocation4], 1
    %889 = vsyncpa [#allocation5], 1

</llo_original>
